<compile_context>
chip_gen: v7x
topology: tpu7x:2x2x1
jax: 0.10.0
libtpu: 0.0.40
codegen_flags: <defaults>
</compile_context>

<pallas_src>
import functools

import jax
import jax.numpy as jnp
from jax.experimental import pallas as pl
from jax.experimental.pallas import tpu as pltpu


def _round_up(x: int, m: int) -> int:
    return ((x + m - 1) // m) * m


def _vmem_limit_bytes() -> int:
    """Generation-aware scoped-VMEM limit (~55% of physical per-core VMEM)."""
    cap = 128 * 1024 * 1024                      # v5e / v6e physical per-core VMEM
    try:
        info = pltpu.get_tpu_info()
        cap = int(getattr(info, "vmem_capacity_bytes", cap))
    except Exception:
        pass                                     # fall back to the 128 MiB assumption
    return min(int(cap * 0.55), 72 * 1024 * 1024)


def _kernel_vmem_bytes(rb: int, vb: int, H: int, F: int) -> int:
    """Rough per-step VMEM footprint (pipeline buffers + scratch)."""
    return (2 * rb * H * 2        # x row tile, double-buffered bf16
            + 1 * H * F * 2       # W1, single-buffered bf16 (grid-invariant)
            + 1 * F * 4           # b1 f32, single-buffered
            + 2 * F * vb * 2      # W2 tile, double-buffered bf16
            + 2 * vb * 4          # b2 tile f32
            + 2 * rb * vb * 2     # output tile, double-buffered bf16
            + rb * F * 2)         # cached hidden scratch bf16


# ----------------------------------------------------------------------------
# Fused GELU-MLP + head kernel. Grid = (row tiles, output/vocab tiles).
# Hidden activations are computed once per row tile (j == 0) into a VMEM
# scratch, then the head weight W2 is streamed one lane-dense tile at a time.
# ----------------------------------------------------------------------------
def _mlp_head_kernel(x_ref, w1_ref, b1_ref, w2_ref, b2_ref, o_ref, h_ref):
    j = pl.program_id(1)

    @pl.when(j == 0)
    def _():
        h = jnp.dot(x_ref[...], w1_ref[...],
                    preferred_element_type=jnp.float32)               # (rb, F) f32
        h = jax.nn.gelu(h + b1_ref[...], approximate=True)            # f32 bias + tanh GELU (EUP)
        h_ref[...] = h.astype(jnp.bfloat16)                           # cached for all j

    o = jnp.dot(h_ref[...], w2_ref[...],
                preferred_element_type=jnp.float32)                   # (rb, vb) f32
    o_ref[...] = (o + b2_ref[...]).astype(o_ref.dtype)                # bf16 writeback


def token_model_forward(params, input_ids, attention_mask,
                        *, row_block=512, v_block=1024):
    """input_ids/attention_mask: [B, T] -> [B, T, out_dim] bf16 (f32 accumulation)."""
    B, T = input_ids.shape
    rows = B * T

    embed = params["embed"]                                # (vocab, H) f32
    w1 = params["w1"].astype(jnp.bfloat16)                 # (H, F)  bf16 MXU input
    b1 = params["b1"]                                      # (1, F)  f32
    w2 = params["w2"].astype(jnp.bfloat16)                 # (F, V)  bf16 MXU input
    b2 = params["b2"]                                      # (1, V)  f32

    H = embed.shape[1]
    F = w1.shape[1]
    V = w2.shape[1]

    # Embedding row gather + attention mask as a fused XLA gather (native TPU
    # gather path). Keeps the vocab-sized table out of kernel VMEM entirely.
    ids = input_ids.reshape(rows).astype(jnp.int32)
    mask = attention_mask.reshape(rows, 1).astype(embed.dtype)
    x = (jnp.take(embed, ids, axis=0) * mask).astype(jnp.bfloat16)    # (rows, H)

    # Lane-dense head: pad the output dim to a multiple of 128 (critic V=1 -> 128).
    V_pad = max(_round_up(V, 128), 128)
    if V_pad != V:
        w2 = jnp.pad(w2, ((0, 0), (0, V_pad - V)))
        b2 = jnp.pad(b2, ((0, 0), (0, V_pad - V)))

    # Tile sizes constrained to the generation-aware VMEM budget.
    vmem_limit = _vmem_limit_bytes()
    rb = max(8, (min(row_block, _round_up(rows, 8)) // 8) * 8)
    vb = min(v_block, V_pad)
    while V_pad % vb:
        vb -= 128
    while _kernel_vmem_bytes(rb, vb, H, F) > int(0.8 * vmem_limit) and rb > 8:
        rb = max(8, (rb // 2 // 8) * 8)
    while _kernel_vmem_bytes(rb, vb, H, F) > int(0.8 * vmem_limit) and vb > 128:
        vb = max(128, (vb // 2 // 128) * 128)
        while V_pad % vb:
            vb -= 128

    # Explicitly pad rows to a multiple of rb: no overhanging row blocks.
    rows_pad = _round_up(rows, rb)
    if rows_pad != rows:
        x = jnp.pad(x, ((0, rows_pad - rows), (0, 0)))

    n_row_tiles = rows_pad // rb
    grid = (n_row_tiles, V_pad // vb)

    cost = pl.CostEstimate(
        flops=2 * rows_pad * (H * F + F * V_pad),
        transcendentals=rows_pad * F,                                  # tanh GELU
        bytes_accessed=(x.size * 2 + w1.size * 2 + b1.size * 4
                        + n_row_tiles * (w2.size * 2 + b2.size * 4)    # W2/b2 re-streamed per row tile
                        + rows_pad * V_pad * 2),                       # bf16 output writeback
    )

    single = pl.Buffered(1)      # grid-invariant operands: no double-buffering
    out = pl.pallas_call(
        _mlp_head_kernel,
        out_shape=jax.ShapeDtypeStruct((rows_pad, V_pad), jnp.bfloat16),
        grid_spec=pltpu.PrefetchScalarGridSpec(
            num_scalar_prefetch=0,
            grid=grid,
            in_specs=[
                pl.BlockSpec((rb, H), lambda i, j: (i, 0)),                       # masked embeddings
                pl.BlockSpec((H, F), lambda i, j: (0, 0), pipeline_mode=single),  # W1 (resident)
                pl.BlockSpec((1, F), lambda i, j: (0, 0), pipeline_mode=single),  # b1 (resident)
                pl.BlockSpec((F, vb), lambda i, j: (0, j)),                       # W2 tile (streamed)
                pl.BlockSpec((1, vb), lambda i, j: (0, j)),                       # b2 tile
            ],
            out_specs=pl.BlockSpec((rb, vb), lambda i, j: (i, j)),
            scratch_shapes=[pltpu.VMEM((rb, F), jnp.bfloat16)],                   # cached hidden
        ),
        compiler_params=pltpu.CompilerParams(
            dimension_semantics=("parallel", "arbitrary"),
            vmem_limit_bytes=vmem_limit,
        ),
        cost_estimate=cost,
    )(x, w1, b1, w2, b2)

    return out[:rows, :V].reshape(B, T, V)


# ----------------------------------------------------------------------------
# Synthetic policy / critic parameters (deterministic).
# ----------------------------------------------------------------------------
def init_token_model(key, vocab, hidden, ffn, out_dim):
    k0, k1, k2, k3, k4 = jax.random.split(key, 5)
    scale = 0.02
    return {
        "embed": scale * jax.random.normal(k0, (vocab, hidden), jnp.float32),
        "w1": scale * jax.random.normal(k1, (hidden, ffn), jnp.float32),
        "b1": 0.01 * jax.random.normal(k2, (1, ffn), jnp.float32),
        "w2": scale * jax.random.normal(k3, (ffn, out_dim), jnp.float32),
        "b2": 0.01 * jax.random.normal(k4, (1, out_dim), jnp.float32),
    }


def policy_and_value_wrapper_forward(
    policy_params,
    critic_params,
    query_responses_input_ids,
    query_responses_attention_mask,
    query_input_ids,
    query_attention_mask,
):
    """Mirrors PolicyAndValueWrapper.forward: returns (policy_out, critic_out)."""
    # TODO(synk): on v7x, co-schedule the two independent models on the two
    # TensorCores (leading parallel "model" grid axis or pl.core_map).
    policy_out = token_model_forward(
        policy_params, query_responses_input_ids, query_responses_attention_mask
    )   # [B, T, V]  logits (bf16)
    critic_out = token_model_forward(
        critic_params, query_input_ids, query_attention_mask
    )   # [B, Tq, 1] scalar values (bf16)
    return policy_out, critic_out


# ----------------------------------------------------------------------------
if __name__ == "__main__":
    key = jax.random.PRNGKey(0)
    k_pol, k_cri, k_qr, k_q = jax.random.split(key, 4)

    B = 2          # batch
    T = 8          # query+response sequence length (policy input)
    Tq = 4         # query-only sequence length (critic input)
    VOCAB = 256    # lane-aligned model dims
    HIDDEN = 256   # 256-multiples fill the 2x256^2 MXU on v6e/v7x
    FFN = 256

    policy_params = init_token_model(k_pol, VOCAB, HIDDEN, FFN, out_dim=VOCAB)
    critic_params = init_token_model(k_cri, VOCAB, HIDDEN, FFN, out_dim=1)

    query_responses_input_ids = jax.random.randint(k_qr, (B, T), 0, VOCAB, jnp.int32)
    query_input_ids = jax.random.randint(k_q, (B, Tq), 0, VOCAB, jnp.int32)
    # Simple right-padding style masks (last position of row 1 masked out).
    query_responses_attention_mask = jnp.ones((B, T), jnp.int32).at[1, -1].set(0)
    query_attention_mask = jnp.ones((B, Tq), jnp.int32).at[1, -1].set(0)

    fwd = jax.jit(
        functools.partial(policy_and_value_wrapper_forward, policy_params, critic_params)
    )
    policy_out, critic_out = fwd(
        query_responses_input_ids,
        query_responses_attention_mask,
        query_input_ids,
        query_attention_mask,
    )
    jax.block_until_ready((policy_out, critic_out))

    assert policy_out.shape == (B, T, VOCAB), policy_out.shape
    assert critic_out.shape == (B, Tq, 1), critic_out.shape

    # Reference check in plain f32 JAX (kernel uses bf16 MXU inputs + bf16
    # writeback with f32 accumulation -> loose tolerance).
    def ref_forward(params, ids, mask):
        x = jnp.take(params["embed"], ids, axis=0) * mask.astype(jnp.float32)[..., None]
        h = jax.nn.gelu(x @ params["w1"] + params["b1"][0], approximate=True)
        return h @ params["w2"] + params["b2"][0]

    ref_pol = ref_forward(policy_params, query_responses_input_ids,
                          query_responses_attention_mask)
    ref_cri = ref_forward(critic_params, query_input_ids, query_attention_mask)
    assert jnp.allclose(policy_out.astype(jnp.float32), ref_pol, atol=2e-2, rtol=2e-2)
    assert jnp.allclose(critic_out.astype(jnp.float32), ref_cri, atol=2e-2, rtol=2e-2)

    print("KERNEL_OK")
</pallas_src>

<mosaic_0001>
module attributes {stable_mosaic.version = 11 : i64} {
  func.func @_mlp_head_kernel(%arg0: i32, %arg1: i32, %arg2: memref<16x256xbf16, #tpu.memory_space<vmem>>, %arg3: memref<256x256xbf16, #tpu.memory_space<vmem>>, %arg4: memref<1x256xf32, #tpu.memory_space<vmem>>, %arg5: memref<256x256xbf16, #tpu.memory_space<vmem>>, %arg6: memref<1x256xf32, #tpu.memory_space<vmem>>, %arg7: memref<16x256xbf16, #tpu.memory_space<vmem>>, %arg8: memref<16x256xbf16, #tpu.memory_space<vmem>>) attributes {dimension_semantics = [#tpu.dimension_semantics<parallel>, #tpu.dimension_semantics<arbitrary>], iteration_bounds = array<i64: 1, 1>, scalar_prefetch = 0 : i64, scratch_operands = 1 : i64, tpu.core_type = #tpu.core_type<tc>, window_params = [{transform_indices = @transform_0, window_bounds = array<i64: 16, 256>}, {pipeline_mode = #tpu.pipeline_mode<synchronous>, transform_indices = @transform_1, window_bounds = array<i64: 256, 256>}, {pipeline_mode = #tpu.pipeline_mode<synchronous>, transform_indices = @transform_2, window_bounds = array<i64: 1, 256>}, {transform_indices = @transform_3, window_bounds = array<i64: 256, 256>}, {transform_indices = @transform_4, window_bounds = array<i64: 1, 256>}, {transform_indices = @transform_5, window_bounds = array<i64: 16, 256>}]} {
    %c0_i32 = arith.constant 0 : i32
    %0 = arith.cmpi eq, %arg1, %c0_i32 : i32
    %1 = arith.extui %0 : i1 to i32
    %c0_i32_0 = arith.constant 0 : i32
    %2 = arith.cmpi ne, %1, %c0_i32_0 : i32
    scf.if %2 {
      %c0_8 = arith.constant 0 : index
      %c0_9 = arith.constant 0 : index
      %11 = vector.load %arg2[%c0_8, %c0_9] : memref<16x256xbf16, #tpu.memory_space<vmem>>, vector<16x256xbf16>
      %c0_10 = arith.constant 0 : index
      %c0_11 = arith.constant 0 : index
      %12 = vector.load %arg3[%c0_10, %c0_11] : memref<256x256xbf16, #tpu.memory_space<vmem>>, vector<256x256xbf16>
      %cst_12 = arith.constant dense<0.000000e+00> : vector<16x256xf32>
      %13 = tpu.matmul %11, %12, %cst_12 {dimension_numbers = #tpu.dot_dimension_numbers<[1], [0], [0], [1], [0, 0, 1, 1], [], []>} : vector<16x256xbf16>, vector<256x256xbf16>, vector<16x256xf32> -> vector<16x256xf32>
      %c0_13 = arith.constant 0 : index
      %c0_14 = arith.constant 0 : index
      %14 = vector.load %arg4[%c0_13, %c0_14] : memref<1x256xf32, #tpu.memory_space<vmem>>, vector<1x256xf32>
      %15 = vector.broadcast %14 : vector<1x256xf32> to vector<16x256xf32>
      %16 = arith.addf %13, %15 : vector<16x256xf32>
      %17 = arith.mulf %16, %16 : vector<16x256xf32>
      %18 = arith.mulf %16, %17 : vector<16x256xf32>
      %cst_15 = arith.constant 4.471500e-02 : f32
      %19 = vector.broadcast %cst_15 : f32 to vector<16x256xf32>
      %20 = arith.mulf %19, %18 : vector<16x256xf32>
      %21 = arith.addf %16, %20 : vector<16x256xf32>
      %cst_16 = arith.constant 0.797884583 : f32
      %22 = vector.broadcast %cst_16 : f32 to vector<16x256xf32>
      %23 = arith.mulf %22, %21 : vector<16x256xf32>
      %24 = math.tanh %23 : vector<16x256xf32>
      %cst_17 = arith.constant 1.000000e+00 : f32
      %25 = vector.broadcast %cst_17 : f32 to vector<16x256xf32>
      %26 = arith.addf %25, %24 : vector<16x256xf32>
      %cst_18 = arith.constant 5.000000e-01 : f32
      %27 = vector.broadcast %cst_18 : f32 to vector<16x256xf32>
      %28 = arith.mulf %27, %26 : vector<16x256xf32>
      %29 = arith.mulf %16, %28 : vector<16x256xf32>
      %30 = arith.truncf %29 : vector<16x256xf32> to vector<16x256xbf16>
      %c0_19 = arith.constant 0 : index
      %c0_20 = arith.constant 0 : index
      %31 = vector.load %arg8[%c0_19, %c0_20] : memref<16x256xbf16, #tpu.memory_space<vmem>>, vector<16x256xbf16>
      tpu.vector_store %arg8[%c0_19, %c0_20], %30 {strides = array<i32>} : memref<16x256xbf16, #tpu.memory_space<vmem>>, vector<16x256xbf16>,
    } else {
    }
    %c0 = arith.constant 0 : index
    %c0_1 = arith.constant 0 : index
    %3 = vector.load %arg8[%c0, %c0_1] : memref<16x256xbf16, #tpu.memory_space<vmem>>, vector<16x256xbf16>
    %c0_2 = arith.constant 0 : index
    %c0_3 = arith.constant 0 : index
    %4 = vector.load %arg5[%c0_2, %c0_3] : memref<256x256xbf16, #tpu.memory_space<vmem>>, vector<256x256xbf16>
    %cst = arith.constant dense<0.000000e+00> : vector<16x256xf32>
    %5 = tpu.matmul %3, %4, %cst {dimension_numbers = #tpu.dot_dimension_numbers<[1], [0], [0], [1], [0, 0, 1, 1], [], []>} : vector<16x256xbf16>, vector<256x256xbf16>, vector<16x256xf32> -> vector<16x256xf32>
    %c0_4 = arith.constant 0 : index
    %c0_5 = arith.constant 0 : index
    %6 = vector.load %arg6[%c0_4, %c0_5] : memref<1x256xf32, #tpu.memory_space<vmem>>, vector<1x256xf32>
    %7 = vector.broadcast %6 : vector<1x256xf32> to vector<16x256xf32>
    %8 = arith.addf %5, %7 : vector<16x256xf32>
    %9 = arith.truncf %8 : vector<16x256xf32> to vector<16x256xbf16>
    %c0_6 = arith.constant 0 : index
    %c0_7 = arith.constant 0 : index
    %10 = vector.load %arg7[%c0_6, %c0_7] : memref<16x256xbf16, #tpu.memory_space<vmem>>, vector<16x256xbf16>
    tpu.vector_store %arg7[%c0_6, %c0_7], %9 {strides = array<i32>} : memref<16x256xbf16, #tpu.memory_space<vmem>>, vector<16x256xbf16>,
    return
  }
  func.func @transform_0(%arg0: i32, %arg1: i32) -> (i32, i32) {
    %c0_i32 = arith.constant 0 : i32
    %c0_i32_0 = arith.constant 0 : i32
    return %arg0, %c0_i32 : i32, i32
  }
  func.func @transform_1(%arg0: i32, %arg1: i32) -> (i32, i32) {
    %c0_i32 = arith.constant 0 : i32
    %c0_i32_0 = arith.constant 0 : i32
    %c0_i32_1 = arith.constant 0 : i32
    return %c0_i32, %c0_i32_0 : i32, i32
  }
  func.func @transform_2(%arg0: i32, %arg1: i32) -> (i32, i32) {
    %c0_i32 = arith.constant 0 : i32
    %c0_i32_0 = arith.constant 0 : i32
    %c0_i32_1 = arith.constant 0 : i32
    return %c0_i32, %c0_i32_0 : i32, i32
  }
  func.func @transform_3(%arg0: i32, %arg1: i32) -> (i32, i32) {
    %c0_i32 = arith.constant 0 : i32
    %c0_i32_0 = arith.constant 0 : i32
    return %c0_i32, %arg1 : i32, i32
  }
  func.func @transform_4(%arg0: i32, %arg1: i32) -> (i32, i32) {
    %c0_i32 = arith.constant 0 : i32
    %c0_i32_0 = arith.constant 0 : i32
    return %c0_i32, %arg1 : i32, i32
  }
  func.func @transform_5(%arg0: i32, %arg1: i32) -> (i32, i32) {
    %c0_i32 = arith.constant 0 : i32
    return %arg0, %arg1 : i32, i32
  }
}

module attributes {stable_mosaic.version = 11 : i64} {
  func.func @_mlp_head_kernel(%arg0: i32, %arg1: i32, %arg2: memref<8x256xbf16, #tpu.memory_space<vmem>>, %arg3: memref<256x256xbf16, #tpu.memory_space<vmem>>, %arg4: memref<1x256xf32, #tpu.memory_space<vmem>>, %arg5: memref<256x128xbf16, #tpu.memory_space<vmem>>, %arg6: memref<1x128xf32, #tpu.memory_space<vmem>>, %arg7: memref<8x128xbf16, #tpu.memory_space<vmem>>, %arg8: memref<8x256xbf16, #tpu.memory_space<vmem>>) attributes {dimension_semantics = [#tpu.dimension_semantics<parallel>, #tpu.dimension_semantics<arbitrary>], iteration_bounds = array<i64: 1, 1>, scalar_prefetch = 0 : i64, scratch_operands = 1 : i64, tpu.core_type = #tpu.core_type<tc>, window_params = [{transform_indices = @transform_0, window_bounds = array<i64: 8, 256>}, {pipeline_mode = #tpu.pipeline_mode<synchronous>, transform_indices = @transform_1, window_bounds = array<i64: 256, 256>}, {pipeline_mode = #tpu.pipeline_mode<synchronous>, transform_indices = @transform_2, window_bounds = array<i64: 1, 256>}, {transform_indices = @transform_3, window_bounds = array<i64: 256, 128>}, {transform_indices = @transform_4, window_bounds = array<i64: 1, 128>}, {transform_indices = @transform_5, window_bounds = array<i64: 8, 128>}]} {
    %c0_i32 = arith.constant 0 : i32
    %0 = arith.cmpi eq, %arg1, %c0_i32 : i32
    %1 = arith.extui %0 : i1 to i32
    %c0_i32_0 = arith.constant 0 : i32
    %2 = arith.cmpi ne, %1, %c0_i32_0 : i32
    scf.if %2 {
      %c0_8 = arith.constant 0 : index
      %c0_9 = arith.constant 0 : index
      %11 = vector.load %arg2[%c0_8, %c0_9] : memref<8x256xbf16, #tpu.memory_space<vmem>>, vector<8x256xbf16>
      %c0_10 = arith.constant 0 : index
      %c0_11 = arith.constant 0 : index
      %12 = vector.load %arg3[%c0_10, %c0_11] : memref<256x256xbf16, #tpu.memory_space<vmem>>, vector<256x256xbf16>
      %cst_12 = arith.constant dense<0.000000e+00> : vector<8x256xf32>
      %13 = tpu.matmul %11, %12, %cst_12 {dimension_numbers = #tpu.dot_dimension_numbers<[1], [0], [0], [1], [0, 0, 1, 1], [], []>} : vector<8x256xbf16>, vector<256x256xbf16>, vector<8x256xf32> -> vector<8x256xf32>
      %c0_13 = arith.constant 0 : index
      %c0_14 = arith.constant 0 : index
      %14 = vector.load %arg4[%c0_13, %c0_14] : memref<1x256xf32, #tpu.memory_space<vmem>>, vector<1x256xf32>
      %15 = vector.broadcast %14 : vector<1x256xf32> to vector<8x256xf32>
      %16 = arith.addf %13, %15 : vector<8x256xf32>
      %17 = arith.mulf %16, %16 : vector<8x256xf32>
      %18 = arith.mulf %16, %17 : vector<8x256xf32>
      %cst_15 = arith.constant 4.471500e-02 : f32
      %19 = vector.broadcast %cst_15 : f32 to vector<8x256xf32>
      %20 = arith.mulf %19, %18 : vector<8x256xf32>
      %21 = arith.addf %16, %20 : vector<8x256xf32>
      %cst_16 = arith.constant 0.797884583 : f32
      %22 = vector.broadcast %cst_16 : f32 to vector<8x256xf32>
      %23 = arith.mulf %22, %21 : vector<8x256xf32>
      %24 = math.tanh %23 : vector<8x256xf32>
      %cst_17 = arith.constant 1.000000e+00 : f32
      %25 = vector.broadcast %cst_17 : f32 to vector<8x256xf32>
      %26 = arith.addf %25, %24 : vector<8x256xf32>
      %cst_18 = arith.constant 5.000000e-01 : f32
      %27 = vector.broadcast %cst_18 : f32 to vector<8x256xf32>
      %28 = arith.mulf %27, %26 : vector<8x256xf32>
      %29 = arith.mulf %16, %28 : vector<8x256xf32>
      %30 = arith.truncf %29 : vector<8x256xf32> to vector<8x256xbf16>
      %c0_19 = arith.constant 0 : index
      %c0_20 = arith.constant 0 : index
      %31 = vector.load %arg8[%c0_19, %c0_20] : memref<8x256xbf16, #tpu.memory_space<vmem>>, vector<8x256xbf16>
      tpu.vector_store %arg8[%c0_19, %c0_20], %30 {strides = array<i32>} : memref<8x256xbf16, #tpu.memory_space<vmem>>, vector<8x256xbf16>,
    } else {
    }
    %c0 = arith.constant 0 : index
    %c0_1 = arith.constant 0 : index
    %3 = vector.load %arg8[%c0, %c0_1] : memref<8x256xbf16, #tpu.memory_space<vmem>>, vector<8x256xbf16>
    %c0_2 = arith.constant 0 : index
    %c0_3 = arith.constant 0 : index
    %4 = vector.load %arg5[%c0_2, %c0_3] : memref<256x128xbf16, #tpu.memory_space<vmem>>, vector<256x128xbf16>
    %cst = arith.constant dense<0.000000e+00> : vector<8x128xf32>
    %5 = tpu.matmul %3, %4, %cst {dimension_numbers = #tpu.dot_dimension_numbers<[1], [0], [0], [1], [0, 0, 1, 1], [], []>} : vector<8x256xbf16>, vector<256x128xbf16>, vector<8x128xf32> -> vector<8x128xf32>
    %c0_4 = arith.constant 0 : index
    %c0_5 = arith.constant 0 : index
    %6 = vector.load %arg6[%c0_4, %c0_5] : memref<1x128xf32, #tpu.memory_space<vmem>>, vector<1x128xf32>
    %7 = vector.broadcast %6 : vector<1x128xf32> to vector<8x128xf32>
    %8 = arith.addf %5, %7 : vector<8x128xf32>
    %9 = arith.truncf %8 : vector<8x128xf32> to vector<8x128xbf16>
    %c0_6 = arith.constant 0 : index
    %c0_7 = arith.constant 0 : index
    %10 = vector.load %arg7[%c0_6, %c0_7] : memref<8x128xbf16, #tpu.memory_space<vmem>>, vector<8x128xbf16>
    tpu.vector_store %arg7[%c0_6, %c0_7], %9 {strides = array<i32>} : memref<8x128xbf16, #tpu.memory_space<vmem>>, vector<8x128xbf16>,
    return
  }
  func.func @transform_0(%arg0: i32, %arg1: i32) -> (i32, i32) {
    %c0_i32 = arith.constant 0 : i32
    %c0_i32_0 = arith.constant 0 : i32
    return %arg0, %c0_i32 : i32, i32
  }
  func.func @transform_1(%arg0: i32, %arg1: i32) -> (i32, i32) {
    %c0_i32 = arith.constant 0 : i32
    %c0_i32_0 = arith.constant 0 : i32
    %c0_i32_1 = arith.constant 0 : i32
    return %c0_i32, %c0_i32_0 : i32, i32
  }
  func.func @transform_2(%arg0: i32, %arg1: i32) -> (i32, i32) {
    %c0_i32 = arith.constant 0 : i32
    %c0_i32_0 = arith.constant 0 : i32
    %c0_i32_1 = arith.constant 0 : i32
    return %c0_i32, %c0_i32_0 : i32, i32
  }
  func.func @transform_3(%arg0: i32, %arg1: i32) -> (i32, i32) {
    %c0_i32 = arith.constant 0 : i32
    %c0_i32_0 = arith.constant 0 : i32
    return %c0_i32, %arg1 : i32, i32
  }
  func.func @transform_4(%arg0: i32, %arg1: i32) -> (i32, i32) {
    %c0_i32 = arith.constant 0 : i32
    %c0_i32_0 = arith.constant 0 : i32
    return %c0_i32, %arg1 : i32, i32
  }
  func.func @transform_5(%arg0: i32, %arg1: i32) -> (i32, i32) {
    %c0_i32 = arith.constant 0 : i32
    return %arg0, %arg1 : i32, i32
  }
}

</mosaic_0001>

<llo_original>
// kernel: policy_and_value_wrapper_forward.3
$region0: #{policy_and_value_wrapper_forward.3}
  #allocation0 [shape = 'u32[]', space=smem, size = 0x4, offset = 0x4, fixed_abs, tag = 'smem constant byte address 0x4 - core index']
  #allocation1 [shape = 'u32[144,128]{1,0:T(1,128)}', space=vmem, size = 0x12000, scoped, tag = 'internal scratch']
  #allocation2 [shape = 'bf16[8,256]{1,0:T(8,128)(2,1)}', space=vmem, size = 0x1000, scoped, tag = 'scratch operand']
  %s0 = inlined_call_operand.hbm [shape: bf16[8,256], index: 0, kind: input, shape index: {}]
  %s1 = inlined_call_operand.hbm [shape: bf16[256,256], index: 1, kind: input, shape index: {}]
  %s2 = inlined_call_operand.hbm [shape: f32[1,256], index: 2, kind: input, shape index: {}]
  %s3 = inlined_call_operand.hbm [shape: bf16[256,128], index: 3, kind: input, shape index: {}]
  %s4 = inlined_call_operand.hbm [shape: f32[1,128], index: 4, kind: input, shape index: {}]
  %s5 = inlined_call_operand.hbm [shape: bf16[8,128], index: 5, kind: output, shape index: {}]
  %s6 = sld [smem:[#allocation0]]
  $region54: #{policy_and_value_wrapper_forward.3} parent=0
    _
  %s8 = ssub.s32 1, %s6
  %s9 = scalar_select 0, %s8, %s6
  $region1: #{policy_and_value_wrapper_forward.3} parent=0
    #allocation3 [shape = 'u8[4096]{0}', space=vmem, size = 0x1000, scoped, tag = 'input window, operand 0, single buffered']
    #allocation4 [shape = 's32[1]{0}', space=sflag, size = 0x4, scoped, tag = 'scoped memory for policy_and_value_wrapper_forward.3']
    #allocation5 [shape = 's32[1]{0}', space=sflag, size = 0x4, scoped, tag = 'scoped memory for policy_and_value_wrapper_forward.3']
    #allocation6 [shape = 'u8[131072]{0}', space=vmem, size = 0x20000, scoped, tag = 'input window, operand 1, single buffered']
    #allocation7 [shape = 's32[1]{0}', space=sflag, size = 0x4, scoped, tag = 'scoped memory for policy_and_value_wrapper_forward.3']
    #allocation8 [shape = 'u8[1024]{0}', space=vmem, size = 0x400, scoped, tag = 'input window, operand 2, single buffered']
    #allocation9 [shape = 'u8[65536]{0}', space=vmem, size = 0x10000, scoped, tag = 'input window, operand 3, single buffered']
    #allocation10 [shape = 's32[1]{0}', space=sflag, size = 0x4, scoped, tag = 'scoped memory for policy_and_value_wrapper_forward.3']
    #allocation11 [shape = 'u8[512]{0}', space=vmem, size = 0x400, scoped, tag = 'input window, operand 4, single buffered']
    #allocation12 [shape = 'u8[2048]{0}', space=vmem, size = 0x800, scoped, tag = 'output window, operand 0, single buffered']
    %10 = vsyncpa [#allocation4], 0
    %11 = vsyncpa [#allocation7], 0
    %12 = vsyncpa [#allocation10], 0
    %13 = vsyncpa [#allocation5], 0
    // Predicated region
    $region2: #{policy_and_value_wrapper_forward.3} parent=1 // pred_check
      _
    $region3: #{policy_and_value_wrapper_forward.3} parent=1 // pred_check_branch
      %15 = sbr.rel (0) target = $region5
    $region4: #{policy_and_value_wrapper_forward.3} parent=1 // pred_region
      %s17 = ssub.s32 128, 128
      %18 = vsyncadd [#allocation4], %s17
      %s20 = sshll.u32 [#allocation3], 4
      %s21 = int_to_ptr.vmem [resolvable:$true] %s20
      %23 = dma.hbm_to_vmem [thread:$0]  %s0, 128, %s21, [#allocation4]
    $region5: #{policy_and_value_wrapper_forward.3} parent=1 // pred_fallthru
      _
    // Predicated region
    $region6: #{policy_and_value_wrapper_forward.3} parent=1 // pred_check
      _
    $region7: #{policy_and_value_wrapper_forward.3} parent=1 // pred_check_branch
      %25 = sbr.rel (0) target = $region9
    $region8: #{policy_and_value_wrapper_forward.3} parent=1 // pred_region
      %s27 = ssub.s32 4096, 4096
      %28 = vsyncadd [#allocation7], %s27
      %s29 = sshll.u32 [#allocation6], 4
      %s30 = int_to_ptr.vmem [resolvable:$true] %s29
      %35 = dma.hbm_to_vmem [thread:$0]  %s1, 4096, %s30, [#allocation7], 128, 128, 8
    $region9: #{policy_and_value_wrapper_forward.3} parent=1 // pred_fallthru
      _
    // Predicated region
    $region10: #{policy_and_value_wrapper_forward.3} parent=1 // pred_check
      _
    $region11: #{policy_and_value_wrapper_forward.3} parent=1 // pred_check_branch
      %37 = sbr.rel (0) target = $region13
    $region12: #{policy_and_value_wrapper_forward.3} parent=1 // pred_region
      %s39 = ssub.s32 32, 32
      %40 = vsyncadd [#allocation7], %s39
      %s42 = sshll.u32 [#allocation8], 4
      %s43 = int_to_ptr.vmem [resolvable:$true] %s42
      %45 = dma.hbm_to_vmem [thread:$0]  %s2, 32, %s43, [#allocation7]
    $region13: #{policy_and_value_wrapper_forward.3} parent=1 // pred_fallthru
      _
    // Predicated region
    $region14: #{policy_and_value_wrapper_forward.3} parent=1 // pred_check
      _
    $region15: #{policy_and_value_wrapper_forward.3} parent=1 // pred_check_branch
      %47 = sbr.rel (0) target = $region17
    $region16: #{policy_and_value_wrapper_forward.3} parent=1 // pred_region
      %s49 = ssub.s32 2048, 2048
      %50 = vsyncadd [#allocation10], %s49
      %s51 = sshll.u32 [#allocation9], 4
      %s52 = int_to_ptr.vmem [resolvable:$true] %s51
      %57 = dma.hbm_to_vmem [thread:$0]  %s3, 2048, %s52, [#allocation10], 64, 64, 4
    $region17: #{policy_and_value_wrapper_forward.3} parent=1 // pred_fallthru
      _
    // Predicated region
    $region18: #{policy_and_value_wrapper_forward.3} parent=1 // pred_check
      _
    $region19: #{policy_and_value_wrapper_forward.3} parent=1 // pred_check_branch
      %59 = sbr.rel (0) target = $region21
    $region20: #{policy_and_value_wrapper_forward.3} parent=1 // pred_region
      %s61 = ssub.s32 16, 16
      %62 = vsyncadd [#allocation10], %s61
      %s64 = sshll.u32 [#allocation11], 4
      %s65 = int_to_ptr.vmem [resolvable:$true] %s64
      %67 = dma.hbm_to_vmem [thread:$0]  %s4, 16, %s65, [#allocation10]
    $region21: #{policy_and_value_wrapper_forward.3} parent=1 // pred_fallthru
      _
    // Predicated region
    $region22: #{policy_and_value_wrapper_forward.3} parent=1 // pred_check
      _
    $region23: #{policy_and_value_wrapper_forward.3} parent=1 // pred_check_branch
      %69 = sbr.rel (0) target = $region25
    $region24: #{policy_and_value_wrapper_forward.3} parent=1 // pred_region
      %70 = dma.done [#allocation4], 128
    $region25: #{policy_and_value_wrapper_forward.3} parent=1 // pred_fallthru
      _
    // Predicated region
    $region26: #{policy_and_value_wrapper_forward.3} parent=1 // pred_check
      _
    $region27: #{policy_and_value_wrapper_forward.3} parent=1 // pred_check_branch
      %72 = sbr.rel (0) target = $region29
    $region28: #{policy_and_value_wrapper_forward.3} parent=1 // pred_region
      %73 = dma.done [#allocation7], 4096
    $region29: #{policy_and_value_wrapper_forward.3} parent=1 // pred_fallthru
      _
    // Predicated region
    $region30: #{policy_and_value_wrapper_forward.3} parent=1 // pred_check
      _
    $region31: #{policy_and_value_wrapper_forward.3} parent=1 // pred_check_branch
      %75 = sbr.rel (0) target = $region33
    $region32: #{policy_and_value_wrapper_forward.3} parent=1 // pred_region
      %76 = dma.done [#allocation7], 32
    $region33: #{policy_and_value_wrapper_forward.3} parent=1 // pred_fallthru
      _
    // Predicated region
    $region34: #{policy_and_value_wrapper_forward.3} parent=1 // pred_check
      _
    $region35: #{policy_and_value_wrapper_forward.3} parent=1 // pred_check_branch
      %78 = sbr.rel (0) target = $region37
    $region36: #{policy_and_value_wrapper_forward.3} parent=1 // pred_region
      %79 = dma.done [#allocation10], 2048
    $region37: #{policy_and_value_wrapper_forward.3} parent=1 // pred_fallthru
      _
    // Predicated region
    $region38: #{policy_and_value_wrapper_forward.3} parent=1 // pred_check
      _
    $region39: #{policy_and_value_wrapper_forward.3} parent=1 // pred_check_branch
      %81 = sbr.rel (0) target = $region41
    $region40: #{policy_and_value_wrapper_forward.3} parent=1 // pred_region
      %82 = dma.done [#allocation10], 16
    $region41: #{policy_and_value_wrapper_forward.3} parent=1 // pred_fallthru
      _
    %p84 = scmp.eq.s32.totalorder 0, 0
    // Predicated region
    $region42: #{policy_and_value_wrapper_forward.3} parent=1 // pred_check
      %p85 = pneg %p84
    $region43: #{policy_and_value_wrapper_forward.3} parent=1 // pred_check_branch
      %87 = sbr.rel (%p85) target = $region45
    $region44: #{policy_and_value_wrapper_forward.3} parent=1 // pred_region
      %v88 = vld [vmem:[#allocation3] sm:$0xff]
      %v89 = vld [vmem:[#allocation6] sm:$0xff]
      %v90 = vld [vmem:[#allocation6 + $0x8] sm:$0xff]
      %v91 = vld [vmem:[#allocation6 + $0x10] sm:$0xff]
      %v92 = vld [vmem:[#allocation6 + $0x18] sm:$0xff]
      %v93 = vld [vmem:[#allocation6 + $0x20] sm:$0xff]
      %v94 = vld [vmem:[#allocation6 + $0x28] sm:$0xff]
      %v95 = vld [vmem:[#allocation6 + $0x30] sm:$0xff]
      %v96 = vld [vmem:[#allocation6 + $0x38] sm:$0xff]
      %v97 = vld [vmem:[#allocation6 + $0x40] sm:$0xff]
      %v98 = vld [vmem:[#allocation6 + $0x48] sm:$0xff]
      %v99 = vld [vmem:[#allocation6 + $0x50] sm:$0xff]
      %v100 = vld [vmem:[#allocation6 + $0x58] sm:$0xff]
      %v101 = vld [vmem:[#allocation6 + $0x60] sm:$0xff]
      %v102 = vld [vmem:[#allocation6 + $0x68] sm:$0xff]
      %v103 = vld [vmem:[#allocation6 + $0x70] sm:$0xff]
      %v104 = vld [vmem:[#allocation6 + $0x78] sm:$0xff]
      %v105 = vld [vmem:[#allocation6 + $0x80] sm:$0xff]
      %v106 = vld [vmem:[#allocation6 + $0x88] sm:$0xff]
      %v107 = vld [vmem:[#allocation6 + $0x90] sm:$0xff]
      %v108 = vld [vmem:[#allocation6 + $0x98] sm:$0xff]
      %v109 = vld [vmem:[#allocation6 + $0xa0] sm:$0xff]
      %v110 = vld [vmem:[#allocation6 + $0xa8] sm:$0xff]
      %v111 = vld [vmem:[#allocation6 + $0xb0] sm:$0xff]
      %v112 = vld [vmem:[#allocation6 + $0xb8] sm:$0xff]
      %v113 = vld [vmem:[#allocation6 + $0xc0] sm:$0xff]
      %v114 = vld [vmem:[#allocation6 + $0xc8] sm:$0xff]
      %v115 = vld [vmem:[#allocation6 + $0xd0] sm:$0xff]
      %v116 = vld [vmem:[#allocation6 + $0xd8] sm:$0xff]
      %v117 = vld [vmem:[#allocation6 + $0xe0] sm:$0xff]
      %v118 = vld [vmem:[#allocation6 + $0xe8] sm:$0xff]
      %v119 = vld [vmem:[#allocation6 + $0xf0] sm:$0xff]
      %v120 = vld [vmem:[#allocation6 + $0xf8] sm:$0xff]
      %v121 = vld [vmem:[#allocation8] sm:$0x3]
      %v123 = vlaneseq
      %v124 = vshrl.u32 %v123, 7
      %v125 = vsub.s32 0, %v124
      %v126 = vrot.slane %v121, %v125
      %v127 = vlaneseq
      %v128 = vshrl.u32 %v127, 7
      %v129 = vsub.s32 1, %v128
      %v130 = vrot.slane %v121, %v129
      %v134 = vunpack.c.l.b16 %v88
      %v135 = vunpack.c.h.b16 %v88
      %v136 = vpack.c.b16 %v134, %v134
      %v137 = vpack.c.b16 %v135, %v135
      %v172 = vunpack.c.l.b16 %v89
      %v173 = vunpack.c.h.b16 %v89
      %v174 = vunpack.c.l.b16 %v90
      %v175 = vunpack.c.h.b16 %v90
      %v176 = vunpack.c.l.b16 %v91
      %v177 = vunpack.c.h.b16 %v91
      %v178 = vunpack.c.l.b16 %v92
      %v179 = vunpack.c.h.b16 %v92
      %v180 = vunpack.c.l.b16 %v93
      %v181 = vunpack.c.h.b16 %v93
      %v182 = vunpack.c.l.b16 %v94
      %v183 = vunpack.c.h.b16 %v94
      %v184 = vunpack.c.l.b16 %v95
      %v185 = vunpack.c.h.b16 %v95
      %v186 = vunpack.c.l.b16 %v96
      %v187 = vunpack.c.h.b16 %v96
      %v188 = vunpack.c.l.b16 %v97
      %v189 = vunpack.c.h.b16 %v97
      %v190 = vunpack.c.l.b16 %v98
      %v191 = vunpack.c.h.b16 %v98
      %v192 = vunpack.c.l.b16 %v99
      %v193 = vunpack.c.h.b16 %v99
      %v194 = vunpack.c.l.b16 %v100
      %v195 = vunpack.c.h.b16 %v100
      %v196 = vunpack.c.l.b16 %v101
      %v197 = vunpack.c.h.b16 %v101
      %v198 = vunpack.c.l.b16 %v102
      %v199 = vunpack.c.h.b16 %v102
      %v200 = vunpack.c.l.b16 %v103
      %v201 = vunpack.c.h.b16 %v103
      %v202 = vunpack.c.l.b16 %v104
      %v203 = vunpack.c.h.b16 %v104
      %v204 = vunpack.c.l.b16 %v105
      %v205 = vunpack.c.h.b16 %v105
      %v206 = vunpack.c.l.b16 %v106
      %v207 = vunpack.c.h.b16 %v106
      %v208 = vunpack.c.l.b16 %v107
      %v209 = vunpack.c.h.b16 %v107
      %v210 = vunpack.c.l.b16 %v108
      %v211 = vunpack.c.h.b16 %v108
      %v212 = vunpack.c.l.b16 %v109
      %v213 = vunpack.c.h.b16 %v109
      %v214 = vunpack.c.l.b16 %v110
      %v215 = vunpack.c.h.b16 %v110
      %v216 = vunpack.c.l.b16 %v111
      %v217 = vunpack.c.h.b16 %v111
      %v218 = vunpack.c.l.b16 %v112
      %v219 = vunpack.c.h.b16 %v112
      %v220 = vunpack.c.l.b16 %v113
      %v221 = vunpack.c.h.b16 %v113
      %v222 = vunpack.c.l.b16 %v114
      %v223 = vunpack.c.h.b16 %v114
      %v224 = vunpack.c.l.b16 %v115
      %v225 = vunpack.c.h.b16 %v115
      %v226 = vunpack.c.l.b16 %v116
      %v227 = vunpack.c.h.b16 %v116
      %v228 = vunpack.c.l.b16 %v117
      %v229 = vunpack.c.h.b16 %v117
      %v230 = vunpack.c.l.b16 %v118
      %v231 = vunpack.c.h.b16 %v118
      %v232 = vunpack.c.l.b16 %v119
      %v233 = vunpack.c.h.b16 %v119
      %v234 = vunpack.c.l.b16 %v120
      %v235 = vunpack.c.h.b16 %v120
      %v236 = vpack.c.b16 %v174, %v172
      %v237 = vpack.c.b16 %v175, %v173
      %v238 = vpack.c.b16 %v178, %v176
      %v239 = vpack.c.b16 %v179, %v177
      %v240 = vpack.c.b16 %v182, %v180
      %v241 = vpack.c.b16 %v183, %v181
      %v242 = vpack.c.b16 %v186, %v184
      %v243 = vpack.c.b16 %v187, %v185
      %v244 = vpack.c.b16 %v190, %v188
      %v245 = vpack.c.b16 %v191, %v189
      %v246 = vpack.c.b16 %v194, %v192
      %v247 = vpack.c.b16 %v195, %v193
      %v248 = vpack.c.b16 %v198, %v196
      %v249 = vpack.c.b16 %v199, %v197
      %v250 = vpack.c.b16 %v202, %v200
      %v251 = vpack.c.b16 %v203, %v201
      %v252 = vpack.c.b16 %v206, %v204
      %v253 = vpack.c.b16 %v207, %v205
      %v254 = vpack.c.b16 %v210, %v208
      %v255 = vpack.c.b16 %v211, %v209
      %v256 = vpack.c.b16 %v214, %v212
      %v257 = vpack.c.b16 %v215, %v213
      %v258 = vpack.c.b16 %v218, %v216
      %v259 = vpack.c.b16 %v219, %v217
      %v260 = vpack.c.b16 %v222, %v220
      %v261 = vpack.c.b16 %v223, %v221
      %v262 = vpack.c.b16 %v226, %v224
      %v263 = vpack.c.b16 %v227, %v225
      %v264 = vpack.c.b16 %v230, %v228
      %v265 = vpack.c.b16 %v231, %v229
      %v266 = vpack.c.b16 %v234, %v232
      %v267 = vpack.c.b16 %v235, %v233
      %300 = vmatprep.subr.bf16.mxu0 %v237
      %301 = vmatpush1.bf16.msra.mxu0 %v236
      %302 = vmatprep.subr.bf16.mxu0 %v239
      %303 = vmatpush1.bf16.msra.mxu0 %v238
      %304 = vmatprep.subr.bf16.mxu0 %v241
      %305 = vmatpush1.bf16.msra.mxu0 %v240
      %306 = vmatprep.subr.bf16.mxu0 %v243
      %307 = vmatpush1.bf16.msra.mxu0 %v242
      %308 = vmatprep.subr.bf16.mxu0 %v245
      %309 = vmatpush1.bf16.msra.mxu0 %v244
      %310 = vmatprep.subr.bf16.mxu0 %v247
      %311 = vmatpush1.bf16.msra.mxu0 %v246
      %312 = vmatprep.subr.bf16.mxu0 %v249
      %313 = vmatpush1.bf16.msra.mxu0 %v248
      %314 = vmatprep.subr.bf16.mxu0 %v251
      %315 = vmatpush1.bf16.msra.mxu0 %v250
      %316 = vmatprep.subr.bf16.mxu0 %v253
      %317 = vmatpush1.bf16.msra.mxu0 %v252
      %318 = vmatprep.subr.bf16.mxu0 %v255
      %319 = vmatpush1.bf16.msra.mxu0 %v254
      %320 = vmatprep.subr.bf16.mxu0 %v257
      %321 = vmatpush1.bf16.msra.mxu0 %v256
      %322 = vmatprep.subr.bf16.mxu0 %v259
      %323 = vmatpush1.bf16.msra.mxu0 %v258
      %324 = vmatprep.subr.bf16.mxu0 %v261
      %325 = vmatpush1.bf16.msra.mxu0 %v260
      %326 = vmatprep.subr.bf16.mxu0 %v263
      %327 = vmatpush1.bf16.msra.mxu0 %v262
      %328 = vmatprep.subr.bf16.mxu0 %v265
      %329 = vmatpush1.bf16.msra.mxu0 %v264
      %330 = vmatprep.subr.bf16.mxu0 %v267
      %331 = vmatpush1.bf16.msra.mxu0 %v266
      %332 = vmatprep.mubr.bf16.mxu0 %v137
      %333 = vmatmul.mubr.bf16.gmra.mrb[0].mxu0 %v136
      %v334 = vpop.f32.mrb[0].mxu0
      %v335 = vadd.f32 %v126, %v334
      %v336 = vpop.f32.mrb[0].mxu0
      %v337 = vadd.f32 %v130, %v336
      %v338 = vpop.f32.mrb[0].mxu0
      %v339 = vpop.f32.mrb[0].mxu0
      %340 = vdwg.mxu0
      %v341 = vmul.f32 %v335, %v335
      %v342 = vmul.f32 %v337, %v337
      %v343 = vmul.f32 %v335, %v341
      %v344 = vmul.f32 %v337, %v342
      %v345 = vmul.f32 %v343, 0.044715
      %v346 = vmul.f32 %v344, 0.044715
      %v347 = vadd.f32 %v335, %v345
      %v348 = vadd.f32 %v337, %v346
      %v349 = vmul.f32 %v347, 0.7978846
      %v350 = vmul.f32 %v348, 0.7978846
      %v351 = vtanh.pop %v349
      %v352 = vtanh.pop %v350
      %v353 = vadd.f32 %v351, 1.0
      %v354 = vadd.f32 %v352, 1.0
      %v355 = vmul.f32 %v353, 0.5
      %v356 = vmul.f32 %v354, 0.5
      %v357 = vmul.f32 %v335, %v355
      %v358 = vmul.f32 %v337, %v356
      %v359 = vpack.c.bf16 %v357, %v357
      %v360 = vpack.c.bf16 %v358, %v358
      %v363 = vunpack.c.l.b16 %v359
      %v364 = vunpack.c.l.b16 %v360
      %v365 = vpack.c.b16 %v364, %v363
      %367 = vst [vmem:[#allocation2] sm:$0xff] %v365
    $region45: #{policy_and_value_wrapper_forward.3} parent=1 // pred_fallthru
      _
    %v368 = vld [vmem:[#allocation2] sm:$0xff]
    %v369 = vld [vmem:[#allocation9] sm:$0xf]
    %v370 = vld [vmem:[#allocation9 + $0x4] sm:$0xf]
    %v371 = vld [vmem:[#allocation9 + $0x8] sm:$0xf]
    %v372 = vld [vmem:[#allocation9 + $0xc] sm:$0xf]
    %v373 = vld [vmem:[#allocation9 + $0x10] sm:$0xf]
    %v374 = vld [vmem:[#allocation9 + $0x14] sm:$0xf]
    %v375 = vld [vmem:[#allocation9 + $0x18] sm:$0xf]
    %v376 = vld [vmem:[#allocation9 + $0x1c] sm:$0xf]
    %v377 = vld [vmem:[#allocation9 + $0x20] sm:$0xf]
    %v378 = vld [vmem:[#allocation9 + $0x24] sm:$0xf]
    %v379 = vld [vmem:[#allocation9 + $0x28] sm:$0xf]
    %v380 = vld [vmem:[#allocation9 + $0x2c] sm:$0xf]
    %v381 = vld [vmem:[#allocation9 + $0x30] sm:$0xf]
    %v382 = vld [vmem:[#allocation9 + $0x34] sm:$0xf]
    %v383 = vld [vmem:[#allocation9 + $0x38] sm:$0xf]
    %v384 = vld [vmem:[#allocation9 + $0x3c] sm:$0xf]
    %v385 = vld [vmem:[#allocation9 + $0x40] sm:$0xf]
    %v386 = vld [vmem:[#allocation9 + $0x44] sm:$0xf]
    %v387 = vld [vmem:[#allocation9 + $0x48] sm:$0xf]
    %v388 = vld [vmem:[#allocation9 + $0x4c] sm:$0xf]
    %v389 = vld [vmem:[#allocation9 + $0x50] sm:$0xf]
    %v390 = vld [vmem:[#allocation9 + $0x54] sm:$0xf]
    %v391 = vld [vmem:[#allocation9 + $0x58] sm:$0xf]
    %v392 = vld [vmem:[#allocation9 + $0x5c] sm:$0xf]
    %v393 = vld [vmem:[#allocation9 + $0x60] sm:$0xf]
    %v394 = vld [vmem:[#allocation9 + $0x64] sm:$0xf]
    %v395 = vld [vmem:[#allocation9 + $0x68] sm:$0xf]
    %v396 = vld [vmem:[#allocation9 + $0x6c] sm:$0xf]
    %v397 = vld [vmem:[#allocation9 + $0x70] sm:$0xf]
    %v398 = vld [vmem:[#allocation9 + $0x74] sm:$0xf]
    %v399 = vld [vmem:[#allocation9 + $0x78] sm:$0xf]
    %v400 = vld [vmem:[#allocation9 + $0x7c] sm:$0xf]
    %v401 = vld [vmem:[#allocation11] sm:$0x1]
    %v403 = vlaneseq
    %v404 = vshrl.u32 %v403, 7
    %v405 = vsub.s32 0, %v404
    %v406 = vrot.slane %v401, %v405
    %v409 = vunpack.c.l.b16 %v368
    %v410 = vunpack.c.h.b16 %v368
    %v411 = vpack.c.b16 %v409, %v409
    %v412 = vpack.c.b16 %v410, %v410
    %v447 = vunpack.c.l.b16 %v369
    %v448 = vunpack.c.l.b16 %v370
    %v449 = vunpack.c.l.b16 %v371
    %v450 = vunpack.c.l.b16 %v372
    %v451 = vunpack.c.l.b16 %v373
    %v452 = vunpack.c.l.b16 %v374
    %v453 = vunpack.c.l.b16 %v375
    %v454 = vunpack.c.l.b16 %v376
    %v455 = vunpack.c.l.b16 %v377
    %v456 = vunpack.c.l.b16 %v378
    %v457 = vunpack.c.l.b16 %v379
    %v458 = vunpack.c.l.b16 %v380
    %v459 = vunpack.c.l.b16 %v381
    %v460 = vunpack.c.l.b16 %v382
    %v461 = vunpack.c.l.b16 %v383
    %v462 = vunpack.c.l.b16 %v384
    %v463 = vunpack.c.l.b16 %v385
    %v464 = vunpack.c.l.b16 %v386
    %v465 = vunpack.c.l.b16 %v387
    %v466 = vunpack.c.l.b16 %v388
    %v467 = vunpack.c.l.b16 %v389
    %v468 = vunpack.c.l.b16 %v390
    %v469 = vunpack.c.l.b16 %v391
    %v470 = vunpack.c.l.b16 %v392
    %v471 = vunpack.c.l.b16 %v393
    %v472 = vunpack.c.l.b16 %v394
    %v473 = vunpack.c.l.b16 %v395
    %v474 = vunpack.c.l.b16 %v396
    %v475 = vunpack.c.l.b16 %v397
    %v476 = vunpack.c.l.b16 %v398
    %v477 = vunpack.c.l.b16 %v399
    %v478 = vunpack.c.l.b16 %v400
    %v479 = vpack.c.b16 %v448, %v447
    %v480 = vpack.c.b16 %v450, %v449
    %v481 = vpack.c.b16 %v452, %v451
    %v482 = vpack.c.b16 %v454, %v453
    %v483 = vpack.c.b16 %v456, %v455
    %v484 = vpack.c.b16 %v458, %v457
    %v485 = vpack.c.b16 %v460, %v459
    %v486 = vpack.c.b16 %v462, %v461
    %v487 = vpack.c.b16 %v464, %v463
    %v488 = vpack.c.b16 %v466, %v465
    %v489 = vpack.c.b16 %v468, %v467
    %v490 = vpack.c.b16 %v470, %v469
    %v491 = vpack.c.b16 %v472, %v471
    %v492 = vpack.c.b16 %v474, %v473
    %v493 = vpack.c.b16 %v476, %v475
    %v494 = vpack.c.b16 %v478, %v477
    %511 = vmatprep.subr.bf16.mxu0 0
    %512 = vmatpush1.bf16.msra.mxu0 %v479
    %513 = vmatprep.subr.bf16.mxu0 0
    %514 = vmatpush1.bf16.msra.mxu0 %v480
    %515 = vmatprep.subr.bf16.mxu0 0
    %516 = vmatpush1.bf16.msra.mxu0 %v481
    %517 = vmatprep.subr.bf16.mxu0 0
    %518 = vmatpush1.bf16.msra.mxu0 %v482
    %519 = vmatprep.subr.bf16.mxu0 0
    %520 = vmatpush1.bf16.msra.mxu0 %v483
    %521 = vmatprep.subr.bf16.mxu0 0
    %522 = vmatpush1.bf16.msra.mxu0 %v484
    %523 = vmatprep.subr.bf16.mxu0 0
    %524 = vmatpush1.bf16.msra.mxu0 %v485
    %525 = vmatprep.subr.bf16.mxu0 0
    %526 = vmatpush1.bf16.msra.mxu0 %v486
    %527 = vmatprep.subr.bf16.mxu0 0
    %528 = vmatpush1.bf16.msra.mxu0 %v487
    %529 = vmatprep.subr.bf16.mxu0 0
    %530 = vmatpush1.bf16.msra.mxu0 %v488
    %531 = vmatprep.subr.bf16.mxu0 0
    %532 = vmatpush1.bf16.msra.mxu0 %v489
    %533 = vmatprep.subr.bf16.mxu0 0
    %534 = vmatpush1.bf16.msra.mxu0 %v490
    %535 = vmatprep.subr.bf16.mxu0 0
    %536 = vmatpush1.bf16.msra.mxu0 %v491
    %537 = vmatprep.subr.bf16.mxu0 0
    %538 = vmatpush1.bf16.msra.mxu0 %v492
    %539 = vmatprep.subr.bf16.mxu0 0
    %540 = vmatpush1.bf16.msra.mxu0 %v493
    %541 = vmatprep.subr.bf16.mxu0 0
    %542 = vmatpush1.bf16.msra.mxu0 %v494
    %543 = vmatprep.mubr.bf16.mxu0 %v412
    %544 = vmatmul.mubr.bf16.gmra.mrb[0].mxu0 %v411
    %v545 = vpop.f32.mrb[0].mxu0
    %v546 = vadd.f32 %v406, %v545
    %v547 = vpop.f32.mrb[0].mxu0
    %v548 = vpop.f32.mrb[0].mxu0
    %v549 = vpop.f32.mrb[0].mxu0
    %550 = vdwg.mxu0
    %v551 = vpack.c.bf16 %v546, %v546
    %552 = vst [vmem:[#allocation12] sm:$0xf] %v551
    // Predicated region
    $region46: #{policy_and_value_wrapper_forward.3} parent=1 // pred_check
      _
    $region47: #{policy_and_value_wrapper_forward.3} parent=1 // pred_check_branch
      %554 = sbr.rel (0) target = $region49
    $region48: #{policy_and_value_wrapper_forward.3} parent=1 // pred_region
      %s556 = ssub.s32 64, 64
      %557 = vsyncadd [#allocation5], %s556
      %s559 = sshll.u32 [#allocation12], 4
      %s560 = int_to_ptr.vmem [resolvable:$true] %s559
      %562 = dma.vmem_to_hbm [thread:$0]  %s560, 64, %s5, [#allocation5]
    $region49: #{policy_and_value_wrapper_forward.3} parent=1 // pred_fallthru
      _
    // Predicated region
    $region50: #{policy_and_value_wrapper_forward.3} parent=1 // pred_check
      _
    $region51: #{policy_and_value_wrapper_forward.3} parent=1 // pred_check_branch
      %564 = sbr.rel (0) target = $region53
    $region52: #{policy_and_value_wrapper_forward.3} parent=1 // pred_region
      %565 = dma.done [#allocation5], 64
    $region53: #{policy_and_value_wrapper_forward.3} parent=1 // pred_fallthru
      _
    %566 = vsyncpa [#allocation4], 1
    %567 = vsyncpa [#allocation7], 1
    %568 = vsyncpa [#allocation10], 1
    %569 = vsyncpa [#allocation5], 1

// kernel: policy_and_value_wrapper_forward.2
$region0: #{policy_and_value_wrapper_forward.2}
  #allocation0 [shape = 'u32[]', space=smem, size = 0x4, offset = 0x4, fixed_abs, tag = 'smem constant byte address 0x4 - core index']
  #allocation1 [shape = 'u32[144,128]{1,0:T(1,128)}', space=vmem, size = 0x12000, scoped, tag = 'internal scratch']
  #allocation2 [shape = 'bf16[16,256]{1,0:T(16,128)(2,1)}', space=vmem, size = 0x2000, scoped, tag = 'scratch operand']
  %s0 = inlined_call_operand.hbm [shape: bf16[16,256], index: 0, kind: input, shape index: {}]
  %s1 = inlined_call_operand.hbm [shape: bf16[256,256], index: 1, kind: input, shape index: {}]
  %s2 = inlined_call_operand.hbm [shape: f32[1,256], index: 2, kind: input, shape index: {}]
  %s3 = inlined_call_operand.hbm [shape: bf16[256,256], index: 3, kind: input, shape index: {}]
  %s4 = inlined_call_operand.hbm [shape: f32[1,256], index: 4, kind: input, shape index: {}]
  %s5 = inlined_call_operand.hbm [shape: bf16[16,256], index: 5, kind: output, shape index: {}]
  %s6 = sld [smem:[#allocation0]]
  $region54: #{policy_and_value_wrapper_forward.2} parent=0
    _
  %s8 = ssub.s32 1, %s6
  %s9 = scalar_select 0, %s8, %s6
  $region1: #{policy_and_value_wrapper_forward.2} parent=0
    #allocation3 [shape = 'u8[8192]{0}', space=vmem, size = 0x2000, scoped, tag = 'input window, operand 0, single buffered']
    #allocation4 [shape = 's32[1]{0}', space=sflag, size = 0x4, scoped, tag = 'scoped memory for policy_and_value_wrapper_forward.2']
    #allocation5 [shape = 's32[1]{0}', space=sflag, size = 0x4, scoped, tag = 'scoped memory for policy_and_value_wrapper_forward.2']
    #allocation6 [shape = 'u8[131072]{0}', space=vmem, size = 0x20000, scoped, tag = 'input window, operand 1, single buffered']
    #allocation7 [shape = 's32[1]{0}', space=sflag, size = 0x4, scoped, tag = 'scoped memory for policy_and_value_wrapper_forward.2']
    #allocation8 [shape = 'u8[1024]{0}', space=vmem, size = 0x400, scoped, tag = 'input window, operand 2, single buffered']
    #allocation9 [shape = 'u8[131072]{0}', space=vmem, size = 0x20000, scoped, tag = 'input window, operand 3, single buffered']
    #allocation10 [shape = 's32[1]{0}', space=sflag, size = 0x4, scoped, tag = 'scoped memory for policy_and_value_wrapper_forward.2']
    #allocation11 [shape = 'u8[1024]{0}', space=vmem, size = 0x400, scoped, tag = 'input window, operand 4, single buffered']
    #allocation12 [shape = 'u8[8192]{0}', space=vmem, size = 0x2000, scoped, tag = 'output window, operand 0, single buffered']
    %10 = vsyncpa [#allocation4], 0
    %11 = vsyncpa [#allocation7], 0
    %12 = vsyncpa [#allocation10], 0
    %13 = vsyncpa [#allocation5], 0
    // Predicated region
    $region2: #{policy_and_value_wrapper_forward.2} parent=1 // pred_check
      _
    $region3: #{policy_and_value_wrapper_forward.2} parent=1 // pred_check_branch
      %15 = sbr.rel (0) target = $region5
    $region4: #{policy_and_value_wrapper_forward.2} parent=1 // pred_region
      %s17 = ssub.s32 256, 256
      %18 = vsyncadd [#allocation4], %s17
      %s19 = sshll.u32 [#allocation3], 4
      %s20 = int_to_ptr.vmem [resolvable:$true] %s19
      %25 = dma.hbm_to_vmem [thread:$0]  %s0, 256, %s20, [#allocation4], 128, 128, 8
    $region5: #{policy_and_value_wrapper_forward.2} parent=1 // pred_fallthru
      _
    // Predicated region
    $region6: #{policy_and_value_wrapper_forward.2} parent=1 // pred_check
      _
    $region7: #{policy_and_value_wrapper_forward.2} parent=1 // pred_check_branch
      %27 = sbr.rel (0) target = $region9
    $region8: #{policy_and_value_wrapper_forward.2} parent=1 // pred_region
      %s29 = ssub.s32 4096, 4096
      %30 = vsyncadd [#allocation7], %s29
      %s31 = sshll.u32 [#allocation6], 4
      %s32 = int_to_ptr.vmem [resolvable:$true] %s31
      %37 = dma.hbm_to_vmem [thread:$0]  %s1, 4096, %s32, [#allocation7], 128, 128, 8
    $region9: #{policy_and_value_wrapper_forward.2} parent=1 // pred_fallthru
      _
    // Predicated region
    $region10: #{policy_and_value_wrapper_forward.2} parent=1 // pred_check
      _
    $region11: #{policy_and_value_wrapper_forward.2} parent=1 // pred_check_branch
      %39 = sbr.rel (0) target = $region13
    $region12: #{policy_and_value_wrapper_forward.2} parent=1 // pred_region
      %s41 = ssub.s32 32, 32
      %42 = vsyncadd [#allocation7], %s41
      %s44 = sshll.u32 [#allocation8], 4
      %s45 = int_to_ptr.vmem [resolvable:$true] %s44
      %47 = dma.hbm_to_vmem [thread:$0]  %s2, 32, %s45, [#allocation7]
    $region13: #{policy_and_value_wrapper_forward.2} parent=1 // pred_fallthru
      _
    // Predicated region
    $region14: #{policy_and_value_wrapper_forward.2} parent=1 // pred_check
      _
    $region15: #{policy_and_value_wrapper_forward.2} parent=1 // pred_check_branch
      %49 = sbr.rel (0) target = $region17
    $region16: #{policy_and_value_wrapper_forward.2} parent=1 // pred_region
      %s51 = ssub.s32 4096, 4096
      %52 = vsyncadd [#allocation10], %s51
      %s53 = sshll.u32 [#allocation9], 4
      %s54 = int_to_ptr.vmem [resolvable:$true] %s53
      %59 = dma.hbm_to_vmem [thread:$0]  %s3, 4096, %s54, [#allocation10], 128, 128, 8
    $region17: #{policy_and_value_wrapper_forward.2} parent=1 // pred_fallthru
      _
    // Predicated region
    $region18: #{policy_and_value_wrapper_forward.2} parent=1 // pred_check
      _
    $region19: #{policy_and_value_wrapper_forward.2} parent=1 // pred_check_branch
      %61 = sbr.rel (0) target = $region21
    $region20: #{policy_and_value_wrapper_forward.2} parent=1 // pred_region
      %s63 = ssub.s32 32, 32
      %64 = vsyncadd [#allocation10], %s63
      %s66 = sshll.u32 [#allocation11], 4
      %s67 = int_to_ptr.vmem [resolvable:$true] %s66
      %69 = dma.hbm_to_vmem [thread:$0]  %s4, 32, %s67, [#allocation10]
    $region21: #{policy_and_value_wrapper_forward.2} parent=1 // pred_fallthru
      _
    // Predicated region
    $region22: #{policy_and_value_wrapper_forward.2} parent=1 // pred_check
      _
    $region23: #{policy_and_value_wrapper_forward.2} parent=1 // pred_check_branch
      %71 = sbr.rel (0) target = $region25
    $region24: #{policy_and_value_wrapper_forward.2} parent=1 // pred_region
      %72 = dma.done [#allocation4], 256
    $region25: #{policy_and_value_wrapper_forward.2} parent=1 // pred_fallthru
      _
    // Predicated region
    $region26: #{policy_and_value_wrapper_forward.2} parent=1 // pred_check
      _
    $region27: #{policy_and_value_wrapper_forward.2} parent=1 // pred_check_branch
      %74 = sbr.rel (0) target = $region29
    $region28: #{policy_and_value_wrapper_forward.2} parent=1 // pred_region
      %75 = dma.done [#allocation7], 4096
    $region29: #{policy_and_value_wrapper_forward.2} parent=1 // pred_fallthru
      _
    // Predicated region
    $region30: #{policy_and_value_wrapper_forward.2} parent=1 // pred_check
      _
    $region31: #{policy_and_value_wrapper_forward.2} parent=1 // pred_check_branch
      %77 = sbr.rel (0) target = $region33
    $region32: #{policy_and_value_wrapper_forward.2} parent=1 // pred_region
      %78 = dma.done [#allocation7], 32
    $region33: #{policy_and_value_wrapper_forward.2} parent=1 // pred_fallthru
      _
    // Predicated region
    $region34: #{policy_and_value_wrapper_forward.2} parent=1 // pred_check
      _
    $region35: #{policy_and_value_wrapper_forward.2} parent=1 // pred_check_branch
      %80 = sbr.rel (0) target = $region37
    $region36: #{policy_and_value_wrapper_forward.2} parent=1 // pred_region
      %81 = dma.done [#allocation10], 4096
    $region37: #{policy_and_value_wrapper_forward.2} parent=1 // pred_fallthru
      _
    // Predicated region
    $region38: #{policy_and_value_wrapper_forward.2} parent=1 // pred_check
      _
    $region39: #{policy_and_value_wrapper_forward.2} parent=1 // pred_check_branch
      %83 = sbr.rel (0) target = $region41
    $region40: #{policy_and_value_wrapper_forward.2} parent=1 // pred_region
      %84 = dma.done [#allocation10], 32
    $region41: #{policy_and_value_wrapper_forward.2} parent=1 // pred_fallthru
      _
    %p85 = scmp.eq.s32.totalorder 0, 0
    // Predicated region
    $region42: #{policy_and_value_wrapper_forward.2} parent=1 // pred_check
      %p86 = pneg %p85
    $region43: #{policy_and_value_wrapper_forward.2} parent=1 // pred_check_branch
      %88 = sbr.rel (%p86) target = $region45
    $region44: #{policy_and_value_wrapper_forward.2} parent=1 // pred_region
      %v89 = vld [vmem:[#allocation3] sm:$0xff]
      %v90 = vld [vmem:[#allocation3 + $0x8] sm:$0xff]
      %v91 = vld [vmem:[#allocation6] sm:$0xff]
      %v92 = vld [vmem:[#allocation6 + $0x8] sm:$0xff]
      %v93 = vld [vmem:[#allocation6 + $0x10] sm:$0xff]
      %v94 = vld [vmem:[#allocation6 + $0x18] sm:$0xff]
      %v95 = vld [vmem:[#allocation6 + $0x20] sm:$0xff]
      %v96 = vld [vmem:[#allocation6 + $0x28] sm:$0xff]
      %v97 = vld [vmem:[#allocation6 + $0x30] sm:$0xff]
      %v98 = vld [vmem:[#allocation6 + $0x38] sm:$0xff]
      %v99 = vld [vmem:[#allocation6 + $0x40] sm:$0xff]
      %v100 = vld [vmem:[#allocation6 + $0x48] sm:$0xff]
      %v101 = vld [vmem:[#allocation6 + $0x50] sm:$0xff]
      %v102 = vld [vmem:[#allocation6 + $0x58] sm:$0xff]
      %v103 = vld [vmem:[#allocation6 + $0x60] sm:$0xff]
      %v104 = vld [vmem:[#allocation6 + $0x68] sm:$0xff]
      %v105 = vld [vmem:[#allocation6 + $0x70] sm:$0xff]
      %v106 = vld [vmem:[#allocation6 + $0x78] sm:$0xff]
      %v107 = vld [vmem:[#allocation6 + $0x80] sm:$0xff]
      %v108 = vld [vmem:[#allocation6 + $0x88] sm:$0xff]
      %v109 = vld [vmem:[#allocation6 + $0x90] sm:$0xff]
      %v110 = vld [vmem:[#allocation6 + $0x98] sm:$0xff]
      %v111 = vld [vmem:[#allocation6 + $0xa0] sm:$0xff]
      %v112 = vld [vmem:[#allocation6 + $0xa8] sm:$0xff]
      %v113 = vld [vmem:[#allocation6 + $0xb0] sm:$0xff]
      %v114 = vld [vmem:[#allocation6 + $0xb8] sm:$0xff]
      %v115 = vld [vmem:[#allocation6 + $0xc0] sm:$0xff]
      %v116 = vld [vmem:[#allocation6 + $0xc8] sm:$0xff]
      %v117 = vld [vmem:[#allocation6 + $0xd0] sm:$0xff]
      %v118 = vld [vmem:[#allocation6 + $0xd8] sm:$0xff]
      %v119 = vld [vmem:[#allocation6 + $0xe0] sm:$0xff]
      %v120 = vld [vmem:[#allocation6 + $0xe8] sm:$0xff]
      %v121 = vld [vmem:[#allocation6 + $0xf0] sm:$0xff]
      %v122 = vld [vmem:[#allocation6 + $0xf8] sm:$0xff]
      %v123 = vld [vmem:[#allocation8] sm:$0x3]
      %v125 = vlaneseq
      %v126 = vshrl.u32 %v125, 7
      %v127 = vsub.s32 0, %v126
      %v128 = vrot.slane %v123, %v127
      %v129 = vlaneseq
      %v130 = vshrl.u32 %v129, 7
      %v131 = vsub.s32 1, %v130
      %v132 = vrot.slane %v123, %v131
      %v137 = vunpack.c.l.b16 %v89
      %v138 = vunpack.c.h.b16 %v89
      %v139 = vunpack.c.l.b16 %v90
      %v140 = vunpack.c.h.b16 %v90
      %v141 = vpack.c.b16 %v139, %v137
      %v142 = vpack.c.b16 %v140, %v138
      %v177 = vunpack.c.l.b16 %v91
      %v178 = vunpack.c.h.b16 %v91
      %v179 = vunpack.c.l.b16 %v92
      %v180 = vunpack.c.h.b16 %v92
      %v181 = vunpack.c.l.b16 %v93
      %v182 = vunpack.c.h.b16 %v93
      %v183 = vunpack.c.l.b16 %v94
      %v184 = vunpack.c.h.b16 %v94
      %v185 = vunpack.c.l.b16 %v95
      %v186 = vunpack.c.h.b16 %v95
      %v187 = vunpack.c.l.b16 %v96
      %v188 = vunpack.c.h.b16 %v96
      %v189 = vunpack.c.l.b16 %v97
      %v190 = vunpack.c.h.b16 %v97
      %v191 = vunpack.c.l.b16 %v98
      %v192 = vunpack.c.h.b16 %v98
      %v193 = vunpack.c.l.b16 %v99
      %v194 = vunpack.c.h.b16 %v99
      %v195 = vunpack.c.l.b16 %v100
      %v196 = vunpack.c.h.b16 %v100
      %v197 = vunpack.c.l.b16 %v101
      %v198 = vunpack.c.h.b16 %v101
      %v199 = vunpack.c.l.b16 %v102
      %v200 = vunpack.c.h.b16 %v102
      %v201 = vunpack.c.l.b16 %v103
      %v202 = vunpack.c.h.b16 %v103
      %v203 = vunpack.c.l.b16 %v104
      %v204 = vunpack.c.h.b16 %v104
      %v205 = vunpack.c.l.b16 %v105
      %v206 = vunpack.c.h.b16 %v105
      %v207 = vunpack.c.l.b16 %v106
      %v208 = vunpack.c.h.b16 %v106
      %v209 = vunpack.c.l.b16 %v107
      %v210 = vunpack.c.h.b16 %v107
      %v211 = vunpack.c.l.b16 %v108
      %v212 = vunpack.c.h.b16 %v108
      %v213 = vunpack.c.l.b16 %v109
      %v214 = vunpack.c.h.b16 %v109
      %v215 = vunpack.c.l.b16 %v110
      %v216 = vunpack.c.h.b16 %v110
      %v217 = vunpack.c.l.b16 %v111
      %v218 = vunpack.c.h.b16 %v111
      %v219 = vunpack.c.l.b16 %v112
      %v220 = vunpack.c.h.b16 %v112
      %v221 = vunpack.c.l.b16 %v113
      %v222 = vunpack.c.h.b16 %v113
      %v223 = vunpack.c.l.b16 %v114
      %v224 = vunpack.c.h.b16 %v114
      %v225 = vunpack.c.l.b16 %v115
      %v226 = vunpack.c.h.b16 %v115
      %v227 = vunpack.c.l.b16 %v116
      %v228 = vunpack.c.h.b16 %v116
      %v229 = vunpack.c.l.b16 %v117
      %v230 = vunpack.c.h.b16 %v117
      %v231 = vunpack.c.l.b16 %v118
      %v232 = vunpack.c.h.b16 %v118
      %v233 = vunpack.c.l.b16 %v119
      %v234 = vunpack.c.h.b16 %v119
      %v235 = vunpack.c.l.b16 %v120
      %v236 = vunpack.c.h.b16 %v120
      %v237 = vunpack.c.l.b16 %v121
      %v238 = vunpack.c.h.b16 %v121
      %v239 = vunpack.c.l.b16 %v122
      %v240 = vunpack.c.h.b16 %v122
      %v241 = vpack.c.b16 %v179, %v177
      %v242 = vpack.c.b16 %v180, %v178
      %v243 = vpack.c.b16 %v183, %v181
      %v244 = vpack.c.b16 %v184, %v182
      %v245 = vpack.c.b16 %v187, %v185
      %v246 = vpack.c.b16 %v188, %v186
      %v247 = vpack.c.b16 %v191, %v189
      %v248 = vpack.c.b16 %v192, %v190
      %v249 = vpack.c.b16 %v195, %v193
      %v250 = vpack.c.b16 %v196, %v194
      %v251 = vpack.c.b16 %v199, %v197
      %v252 = vpack.c.b16 %v200, %v198
      %v253 = vpack.c.b16 %v203, %v201
      %v254 = vpack.c.b16 %v204, %v202
      %v255 = vpack.c.b16 %v207, %v205
      %v256 = vpack.c.b16 %v208, %v206
      %v257 = vpack.c.b16 %v211, %v209
      %v258 = vpack.c.b16 %v212, %v210
      %v259 = vpack.c.b16 %v215, %v213
      %v260 = vpack.c.b16 %v216, %v214
      %v261 = vpack.c.b16 %v219, %v217
      %v262 = vpack.c.b16 %v220, %v218
      %v263 = vpack.c.b16 %v223, %v221
      %v264 = vpack.c.b16 %v224, %v222
      %v265 = vpack.c.b16 %v227, %v225
      %v266 = vpack.c.b16 %v228, %v226
      %v267 = vpack.c.b16 %v231, %v229
      %v268 = vpack.c.b16 %v232, %v230
      %v269 = vpack.c.b16 %v235, %v233
      %v270 = vpack.c.b16 %v236, %v234
      %v271 = vpack.c.b16 %v239, %v237
      %v272 = vpack.c.b16 %v240, %v238
      %305 = vmatprep.subr.bf16.mxu0 %v242
      %306 = vmatpush1.bf16.msra.mxu0 %v241
      %307 = vmatprep.subr.bf16.mxu0 %v244
      %308 = vmatpush1.bf16.msra.mxu0 %v243
      %309 = vmatprep.subr.bf16.mxu0 %v246
      %310 = vmatpush1.bf16.msra.mxu0 %v245
      %311 = vmatprep.subr.bf16.mxu0 %v248
      %312 = vmatpush1.bf16.msra.mxu0 %v247
      %313 = vmatprep.subr.bf16.mxu0 %v250
      %314 = vmatpush1.bf16.msra.mxu0 %v249
      %315 = vmatprep.subr.bf16.mxu0 %v252
      %316 = vmatpush1.bf16.msra.mxu0 %v251
      %317 = vmatprep.subr.bf16.mxu0 %v254
      %318 = vmatpush1.bf16.msra.mxu0 %v253
      %319 = vmatprep.subr.bf16.mxu0 %v256
      %320 = vmatpush1.bf16.msra.mxu0 %v255
      %321 = vmatprep.subr.bf16.mxu0 %v258
      %322 = vmatpush1.bf16.msra.mxu0 %v257
      %323 = vmatprep.subr.bf16.mxu0 %v260
      %324 = vmatpush1.bf16.msra.mxu0 %v259
      %325 = vmatprep.subr.bf16.mxu0 %v262
      %326 = vmatpush1.bf16.msra.mxu0 %v261
      %327 = vmatprep.subr.bf16.mxu0 %v264
      %328 = vmatpush1.bf16.msra.mxu0 %v263
      %329 = vmatprep.subr.bf16.mxu0 %v266
      %330 = vmatpush1.bf16.msra.mxu0 %v265
      %331 = vmatprep.subr.bf16.mxu0 %v268
      %332 = vmatpush1.bf16.msra.mxu0 %v267
      %333 = vmatprep.subr.bf16.mxu0 %v270
      %334 = vmatpush1.bf16.msra.mxu0 %v269
      %335 = vmatprep.subr.bf16.mxu0 %v272
      %336 = vmatpush1.bf16.msra.mxu0 %v271
      %337 = vmatprep.mubr.bf16.mxu0 %v142
      %338 = vmatmul.mubr.bf16.gmra.mrb[0].mxu0 %v141
      %v339 = vpop.f32.mrb[0].mxu0
      %v340 = vadd.f32 %v128, %v339
      %v341 = vpop.f32.mrb[0].mxu0
      %v342 = vadd.f32 %v132, %v341
      %v343 = vpop.f32.mrb[0].mxu0
      %v344 = vadd.f32 %v128, %v343
      %v345 = vpop.f32.mrb[0].mxu0
      %v346 = vadd.f32 %v132, %v345
      %347 = vdwg.mxu0
      %v348 = vmul.f32 %v340, %v340
      %v349 = vmul.f32 %v342, %v342
      %v350 = vmul.f32 %v344, %v344
      %v351 = vmul.f32 %v346, %v346
      %v352 = vmul.f32 %v340, %v348
      %v353 = vmul.f32 %v342, %v349
      %v354 = vmul.f32 %v344, %v350
      %v355 = vmul.f32 %v346, %v351
      %v356 = vmul.f32 %v352, 0.044715
      %v357 = vmul.f32 %v353, 0.044715
      %v358 = vmul.f32 %v354, 0.044715
      %v359 = vmul.f32 %v355, 0.044715
      %v360 = vadd.f32 %v340, %v356
      %v361 = vadd.f32 %v342, %v357
      %v362 = vadd.f32 %v344, %v358
      %v363 = vadd.f32 %v346, %v359
      %v364 = vmul.f32 %v360, 0.7978846
      %v365 = vmul.f32 %v361, 0.7978846
      %v366 = vmul.f32 %v362, 0.7978846
      %v367 = vmul.f32 %v363, 0.7978846
      %v368 = vtanh.pop %v364
      %v369 = vtanh.pop %v365
      %v370 = vtanh.pop %v366
      %v371 = vtanh.pop %v367
      %v372 = vadd.f32 %v368, 1.0
      %v373 = vadd.f32 %v369, 1.0
      %v374 = vadd.f32 %v370, 1.0
      %v375 = vadd.f32 %v371, 1.0
      %v376 = vmul.f32 %v372, 0.5
      %v377 = vmul.f32 %v373, 0.5
      %v378 = vmul.f32 %v374, 0.5
      %v379 = vmul.f32 %v375, 0.5
      %v380 = vmul.f32 %v340, %v376
      %v381 = vmul.f32 %v342, %v377
      %v382 = vmul.f32 %v344, %v378
      %v383 = vmul.f32 %v346, %v379
      %v384 = vpack.c.bf16 %v382, %v380
      %v385 = vpack.c.bf16 %v383, %v381
      %386 = vst [vmem:[#allocation2] sm:$0xff] %v384
      %387 = vst [vmem:[#allocation2 + $0x8] sm:$0xff] %v385
    $region45: #{policy_and_value_wrapper_forward.2} parent=1 // pred_fallthru
      _
    %v388 = vld [vmem:[#allocation2] sm:$0xff]
    %v389 = vld [vmem:[#allocation2 + $0x8] sm:$0xff]
    %v390 = vld [vmem:[#allocation9] sm:$0xff]
    %v391 = vld [vmem:[#allocation9 + $0x8] sm:$0xff]
    %v392 = vld [vmem:[#allocation9 + $0x10] sm:$0xff]
    %v393 = vld [vmem:[#allocation9 + $0x18] sm:$0xff]
    %v394 = vld [vmem:[#allocation9 + $0x20] sm:$0xff]
    %v395 = vld [vmem:[#allocation9 + $0x28] sm:$0xff]
    %v396 = vld [vmem:[#allocation9 + $0x30] sm:$0xff]
    %v397 = vld [vmem:[#allocation9 + $0x38] sm:$0xff]
    %v398 = vld [vmem:[#allocation9 + $0x40] sm:$0xff]
    %v399 = vld [vmem:[#allocation9 + $0x48] sm:$0xff]
    %v400 = vld [vmem:[#allocation9 + $0x50] sm:$0xff]
    %v401 = vld [vmem:[#allocation9 + $0x58] sm:$0xff]
    %v402 = vld [vmem:[#allocation9 + $0x60] sm:$0xff]
    %v403 = vld [vmem:[#allocation9 + $0x68] sm:$0xff]
    %v404 = vld [vmem:[#allocation9 + $0x70] sm:$0xff]
    %v405 = vld [vmem:[#allocation9 + $0x78] sm:$0xff]
    %v406 = vld [vmem:[#allocation9 + $0x80] sm:$0xff]
    %v407 = vld [vmem:[#allocation9 + $0x88] sm:$0xff]
    %v408 = vld [vmem:[#allocation9 + $0x90] sm:$0xff]
    %v409 = vld [vmem:[#allocation9 + $0x98] sm:$0xff]
    %v410 = vld [vmem:[#allocation9 + $0xa0] sm:$0xff]
    %v411 = vld [vmem:[#allocation9 + $0xa8] sm:$0xff]
    %v412 = vld [vmem:[#allocation9 + $0xb0] sm:$0xff]
    %v413 = vld [vmem:[#allocation9 + $0xb8] sm:$0xff]
    %v414 = vld [vmem:[#allocation9 + $0xc0] sm:$0xff]
    %v415 = vld [vmem:[#allocation9 + $0xc8] sm:$0xff]
    %v416 = vld [vmem:[#allocation9 + $0xd0] sm:$0xff]
    %v417 = vld [vmem:[#allocation9 + $0xd8] sm:$0xff]
    %v418 = vld [vmem:[#allocation9 + $0xe0] sm:$0xff]
    %v419 = vld [vmem:[#allocation9 + $0xe8] sm:$0xff]
    %v420 = vld [vmem:[#allocation9 + $0xf0] sm:$0xff]
    %v421 = vld [vmem:[#allocation9 + $0xf8] sm:$0xff]
    %v422 = vld [vmem:[#allocation11] sm:$0x3]
    %v424 = vlaneseq
    %v425 = vshrl.u32 %v424, 7
    %v426 = vsub.s32 0, %v425
    %v427 = vrot.slane %v422, %v426
    %v428 = vlaneseq
    %v429 = vshrl.u32 %v428, 7
    %v430 = vsub.s32 1, %v429
    %v431 = vrot.slane %v422, %v430
    %v466 = vunpack.c.l.b16 %v390
    %v467 = vunpack.c.h.b16 %v390
    %v468 = vunpack.c.l.b16 %v391
    %v469 = vunpack.c.h.b16 %v391
    %v470 = vunpack.c.l.b16 %v392
    %v471 = vunpack.c.h.b16 %v392
    %v472 = vunpack.c.l.b16 %v393
    %v473 = vunpack.c.h.b16 %v393
    %v474 = vunpack.c.l.b16 %v394
    %v475 = vunpack.c.h.b16 %v394
    %v476 = vunpack.c.l.b16 %v395
    %v477 = vunpack.c.h.b16 %v395
    %v478 = vunpack.c.l.b16 %v396
    %v479 = vunpack.c.h.b16 %v396
    %v480 = vunpack.c.l.b16 %v397
    %v481 = vunpack.c.h.b16 %v397
    %v482 = vunpack.c.l.b16 %v398
    %v483 = vunpack.c.h.b16 %v398
    %v484 = vunpack.c.l.b16 %v399
    %v485 = vunpack.c.h.b16 %v399
    %v486 = vunpack.c.l.b16 %v400
    %v487 = vunpack.c.h.b16 %v400
    %v488 = vunpack.c.l.b16 %v401
    %v489 = vunpack.c.h.b16 %v401
    %v490 = vunpack.c.l.b16 %v402
    %v491 = vunpack.c.h.b16 %v402
    %v492 = vunpack.c.l.b16 %v403
    %v493 = vunpack.c.h.b16 %v403
    %v494 = vunpack.c.l.b16 %v404
    %v495 = vunpack.c.h.b16 %v404
    %v496 = vunpack.c.l.b16 %v405
    %v497 = vunpack.c.h.b16 %v405
    %v498 = vunpack.c.l.b16 %v406
    %v499 = vunpack.c.h.b16 %v406
    %v500 = vunpack.c.l.b16 %v407
    %v501 = vunpack.c.h.b16 %v407
    %v502 = vunpack.c.l.b16 %v408
    %v503 = vunpack.c.h.b16 %v408
    %v504 = vunpack.c.l.b16 %v409
    %v505 = vunpack.c.h.b16 %v409
    %v506 = vunpack.c.l.b16 %v410
    %v507 = vunpack.c.h.b16 %v410
    %v508 = vunpack.c.l.b16 %v411
    %v509 = vunpack.c.h.b16 %v411
    %v510 = vunpack.c.l.b16 %v412
    %v511 = vunpack.c.h.b16 %v412
    %v512 = vunpack.c.l.b16 %v413
    %v513 = vunpack.c.h.b16 %v413
    %v514 = vunpack.c.l.b16 %v414
    %v515 = vunpack.c.h.b16 %v414
    %v516 = vunpack.c.l.b16 %v415
    %v517 = vunpack.c.h.b16 %v415
    %v518 = vunpack.c.l.b16 %v416
    %v519 = vunpack.c.h.b16 %v416
    %v520 = vunpack.c.l.b16 %v417
    %v521 = vunpack.c.h.b16 %v417
    %v522 = vunpack.c.l.b16 %v418
    %v523 = vunpack.c.h.b16 %v418
    %v524 = vunpack.c.l.b16 %v419
    %v525 = vunpack.c.h.b16 %v419
    %v526 = vunpack.c.l.b16 %v420
    %v527 = vunpack.c.h.b16 %v420
    %v528 = vunpack.c.l.b16 %v421
    %v529 = vunpack.c.h.b16 %v421
    %v530 = vpack.c.b16 %v468, %v466
    %v531 = vpack.c.b16 %v469, %v467
    %v532 = vpack.c.b16 %v472, %v470
    %v533 = vpack.c.b16 %v473, %v471
    %v534 = vpack.c.b16 %v476, %v474
    %v535 = vpack.c.b16 %v477, %v475
    %v536 = vpack.c.b16 %v480, %v478
    %v537 = vpack.c.b16 %v481, %v479
    %v538 = vpack.c.b16 %v484, %v482
    %v539 = vpack.c.b16 %v485, %v483
    %v540 = vpack.c.b16 %v488, %v486
    %v541 = vpack.c.b16 %v489, %v487
    %v542 = vpack.c.b16 %v492, %v490
    %v543 = vpack.c.b16 %v493, %v491
    %v544 = vpack.c.b16 %v496, %v494
    %v545 = vpack.c.b16 %v497, %v495
    %v546 = vpack.c.b16 %v500, %v498
    %v547 = vpack.c.b16 %v501, %v499
    %v548 = vpack.c.b16 %v504, %v502
    %v549 = vpack.c.b16 %v505, %v503
    %v550 = vpack.c.b16 %v508, %v506
    %v551 = vpack.c.b16 %v509, %v507
    %v552 = vpack.c.b16 %v512, %v510
    %v553 = vpack.c.b16 %v513, %v511
    %v554 = vpack.c.b16 %v516, %v514
    %v555 = vpack.c.b16 %v517, %v515
    %v556 = vpack.c.b16 %v520, %v518
    %v557 = vpack.c.b16 %v521, %v519
    %v558 = vpack.c.b16 %v524, %v522
    %v559 = vpack.c.b16 %v525, %v523
    %v560 = vpack.c.b16 %v528, %v526
    %v561 = vpack.c.b16 %v529, %v527
    %594 = vmatprep.subr.bf16.mxu0 %v531
    %595 = vmatpush1.bf16.msra.mxu0 %v530
    %596 = vmatprep.subr.bf16.mxu0 %v533
    %597 = vmatpush1.bf16.msra.mxu0 %v532
    %598 = vmatprep.subr.bf16.mxu0 %v535
    %599 = vmatpush1.bf16.msra.mxu0 %v534
    %600 = vmatprep.subr.bf16.mxu0 %v537
    %601 = vmatpush1.bf16.msra.mxu0 %v536
    %602 = vmatprep.subr.bf16.mxu0 %v539
    %603 = vmatpush1.bf16.msra.mxu0 %v538
    %604 = vmatprep.subr.bf16.mxu0 %v541
    %605 = vmatpush1.bf16.msra.mxu0 %v540
    %606 = vmatprep.subr.bf16.mxu0 %v543
    %607 = vmatpush1.bf16.msra.mxu0 %v542
    %608 = vmatprep.subr.bf16.mxu0 %v545
    %609 = vmatpush1.bf16.msra.mxu0 %v544
    %610 = vmatprep.subr.bf16.mxu0 %v547
    %611 = vmatpush1.bf16.msra.mxu0 %v546
    %612 = vmatprep.subr.bf16.mxu0 %v549
    %613 = vmatpush1.bf16.msra.mxu0 %v548
    %614 = vmatprep.subr.bf16.mxu0 %v551
    %615 = vmatpush1.bf16.msra.mxu0 %v550
    %616 = vmatprep.subr.bf16.mxu0 %v553
    %617 = vmatpush1.bf16.msra.mxu0 %v552
    %618 = vmatprep.subr.bf16.mxu0 %v555
    %619 = vmatpush1.bf16.msra.mxu0 %v554
    %620 = vmatprep.subr.bf16.mxu0 %v557
    %621 = vmatpush1.bf16.msra.mxu0 %v556
    %622 = vmatprep.subr.bf16.mxu0 %v559
    %623 = vmatpush1.bf16.msra.mxu0 %v558
    %624 = vmatprep.subr.bf16.mxu0 %v561
    %625 = vmatpush1.bf16.msra.mxu0 %v560
    %626 = vmatprep.mubr.bf16.mxu0 %v389
    %627 = vmatmul.mubr.bf16.gmra.mrb[0].mxu0 %v388
    %v628 = vpop.f32.mrb[0].mxu0
    %v629 = vadd.f32 %v427, %v628
    %v630 = vpop.f32.mrb[0].mxu0
    %v631 = vadd.f32 %v431, %v630
    %v632 = vpop.f32.mrb[0].mxu0
    %v633 = vadd.f32 %v427, %v632
    %v634 = vpop.f32.mrb[0].mxu0
    %v635 = vadd.f32 %v431, %v634
    %636 = vdwg.mxu0
    %v637 = vpack.c.bf16 %v633, %v629
    %v638 = vpack.c.bf16 %v635, %v631
    %v641 = vunpack.c.l.b16 %v637
    %v642 = vunpack.c.l.b16 %v638
    %v643 = vunpack.c.h.b16 %v637
    %v644 = vunpack.c.h.b16 %v638
    %v645 = vpack.c.b16 %v642, %v641
    %v646 = vpack.c.b16 %v644, %v643
    %649 = vst [vmem:[#allocation12] sm:$0xff] %v645
    %650 = vst [vmem:[#allocation12 + $0x8] sm:$0xff] %v646
    // Predicated region
    $region46: #{policy_and_value_wrapper_forward.2} parent=1 // pred_check
      _
    $region47: #{policy_and_value_wrapper_forward.2} parent=1 // pred_check_branch
      %652 = sbr.rel (0) target = $region49
    $region48: #{policy_and_value_wrapper_forward.2} parent=1 // pred_region
      %s654 = ssub.s32 256, 256
      %655 = vsyncadd [#allocation5], %s654
      %s656 = sshll.u32 [#allocation12], 4
      %s657 = int_to_ptr.vmem [resolvable:$true] %s656
      %662 = dma.vmem_to_hbm [thread:$0]  %s657, 256, %s5, [#allocation5], 128, 128, 8
    $region49: #{policy_and_value_wrapper_forward.2} parent=1 // pred_fallthru
      _
    // Predicated region
    $region50: #{policy_and_value_wrapper_forward.2} parent=1 // pred_check
      _
    $region51: #{policy_and_value_wrapper_forward.2} parent=1 // pred_check_branch
      %664 = sbr.rel (0) target = $region53
    $region52: #{policy_and_value_wrapper_forward.2} parent=1 // pred_region
      %665 = dma.done [#allocation5], 256
    $region53: #{policy_and_value_wrapper_forward.2} parent=1 // pred_fallthru
      _
    %666 = vsyncpa [#allocation4], 1
    %667 = vsyncpa [#allocation7], 1
    %668 = vsyncpa [#allocation10], 1
    %669 = vsyncpa [#allocation5], 1

</llo_original>
